<compile_context>
chip_gen: v6e
topology: v6e:2x2x1
jax: 0.10.0
libtpu: 0.0.40
codegen_flags: <defaults>
</compile_context>

<pallas_src>
import math
import functools
import numpy as np

import jax
import jax.numpy as jnp
from jax import lax
from jax.experimental import pallas as pl
from jax.experimental.pallas import tpu as pltpu


# ---------------------------------------------------------------------------
# Kernel
# ---------------------------------------------------------------------------
def _cma_kernel(img_ref, heat_ref, w_ref, m_ref, aux_ref, o_ref, *, eps):
    """Fused forward for one batch block.

    Shapes (bb = batch block rows, L = seq_len, E = embed, LE = L*E):
      img_ref : (bb, 1, LE)  image tokens, flattened per batch row (lane dense)
      heat_ref: (bb, 1, E)   heat-map token (f32)
      w_ref   : (E, LE)      fused + L-tiled heat->attn_out weight (pre-transposed)
      m_ref   : (LE, LE)     block-diagonal group-average matrix (entries 1/E)
      aux_ref : (3, LE)      rows = [fused bias; LN gamma; LN beta], L-tiled
      o_ref   : (bb, 1, LE)  output (dtype = input dtype; may be bf16)
    """
    x = img_ref[:, 0, :].astype(jnp.float32)          # (bb, LE)
    h = heat_ref[:, 0, :]                              # (bb, E)

    bias = aux_ref[0:1, :]                             # (1, LE)
    gamma = aux_ref[1:2, :]                            # (1, LE)
    beta = aux_ref[2:3, :]                             # (1, LE)

    # Softmax over a single key token == 1, so the attention output is a fixed
    # linear map of the heat token broadcast over the L query tokens; the whole
    # weight chain was fused & L-tiled on the host -> one (bb,E)x(E,LE) matmul.
    attn = jnp.dot(h, w_ref[...], preferred_element_type=jnp.float32) + bias

    # Residual + per-token LayerNorm.  m_ref is the fused block-diagonal group
    # average matrix, so mean and variance each cost a single MXU pass and the
    # whole body stays lane-dense (no reshapes, no masked stores).
    y = x + attn
    mu = jnp.dot(y, m_ref[...], preferred_element_type=jnp.float32)
    d = y - mu
    var = jnp.dot(d * d, m_ref[...], preferred_element_type=jnp.float32)
    o_ref[:, 0, :] = (d * lax.rsqrt(var + eps) * gamma + beta).astype(o_ref.dtype)


# ---------------------------------------------------------------------------
# Host-side parameter fusion (do this ONCE per parameter set, not per call)
# ---------------------------------------------------------------------------
def fuse_cross_modal_params(params, seq_len):
    """attn_out_row = heat @ (Whp^T Wv^T Wo^T) + ((bhp Wv^T + bv) Wo^T + bo)."""
    (w_ip, b_ip, w_hp, b_hp, w_q, b_q, w_k, b_k,
     w_v, b_v, w_o, b_o, gamma, beta) = params
    del w_ip, b_ip, w_q, b_q, w_k, b_k          # mathematically dead (1 key token)

    E = w_hp.shape[0]
    L = int(seq_len)
    LE = L * E
    hi = lax.Precision.HIGHEST                   # don't bake bf16 MXU rounding in

    w_fused_t = jnp.dot(jnp.dot(w_hp.T, w_v.T, precision=hi), w_o.T, precision=hi)  # (E, E)
    b_fused = jnp.dot(jnp.dot(b_hp, w_v.T, precision=hi) + b_v, w_o.T, precision=hi) + b_o

    w_tiled = jnp.tile(w_fused_t, (1, L)).astype(jnp.float32)                       # (E, LE)

    token_of = jnp.arange(LE) // E
    m_group = ((token_of[:, None] == token_of[None, :]).astype(jnp.float32)
               / float(E))                                                           # (LE, LE)

    aux = jnp.stack([jnp.tile(b_fused, L),
                     jnp.tile(gamma, L),
                     jnp.tile(beta, L)], axis=0).astype(jnp.float32)                 # (3, LE)
    return w_tiled, m_group, aux


def _num_tensorcores():
    """Best-effort TensorCore count (1 on v5e/v6e, 2 on v7x); safe fallback = 1."""
    try:
        info = pltpu.get_tpu_info()
        for name in ("num_cores", "core_count", "num_tensorcores", "tensorcore_count"):
            v = getattr(info, name, None)
            if v:
                return int(v)
    except Exception:
        pass
    return 1


# ---------------------------------------------------------------------------
# Wrapper
# ---------------------------------------------------------------------------
def cross_modal_attention(img_feat, heat_feat, params=None, num_heads=None,
                          eps=1e-5, fused=None, block_rows=None):
    """Pallas TPU forward of CrossModalAttention (eval mode, dropout = identity).

    img_feat : (B, L, E)  f32 or bf16 (output dtype follows img_feat dtype)
    heat_feat: (B, E)     single heat token per batch row
    Pass `fused = fuse_cross_modal_params(params, L)` to hoist parameter fusion
    out of the per-call path.
    """
    del num_heads  # output does not depend on the head count (single key token)
    B, L, E = img_feat.shape
    assert heat_feat.ndim == 2 and heat_feat.shape == (B, E), (
        "kernel is only valid for exactly one heat token per batch row")
    LE = L * E

    if fused is None:
        fused = fuse_cross_modal_params(params, L)
    w_tiled, m_group, aux = fused

    # Batch tiling: many moderate blocks so the BlockSpec pipeline overlaps
    # input DMA / compute / output writeback (the kernel is HBM-BW bound at
    # large B).  1024 rows keeps double-buffered I/O far under the v7x scoped
    # VMEM default, so no vmem_limit_bytes override is needed.
    if block_rows is None:
        block_rows = 1024
    bb = max(1, min(B, block_rows))
    num_blocks = pl.cdiv(B, bb)

    # Hardware-aware core split: only ask for cross-TC sharding on multi-TC
    # chips (v7x) when there are blocks to shard; single-TC chips get a plain
    # (often single-step) grid with no extra per-step overhead.
    sem = pltpu.PARALLEL
    ntc = _num_tensorcores()
    if ntc > 1 and num_blocks >= ntc and num_blocks % ntc == 0:
        sem = pltpu.CORE_PARALLEL

    img3 = img_feat.reshape(B, 1, LE)                    # lane-dense rows (LE % 128 == 0)
    heat3 = heat_feat.astype(jnp.float32).reshape(B, 1, E)
    out_dtype = img_feat.dtype

    kernel = functools.partial(_cma_kernel, eps=eps)

    def resident(shape):
        # constant index_map -> operand stays resident in VMEM across all blocks
        return pl.BlockSpec(shape, lambda i: (0,) * len(shape))

    out = pl.pallas_call(
        kernel,
        out_shape=jax.ShapeDtypeStruct((B, 1, LE), out_dtype),
        grid=(num_blocks,),
        in_specs=[
            pl.BlockSpec((bb, 1, LE), lambda i: (i, 0, 0)),   # image tokens (flattened)
            pl.BlockSpec((bb, 1, E), lambda i: (i, 0, 0)),    # heat token
            resident((E, LE)),                                # fused + tiled weight
            resident((LE, LE)),                               # block-diag group-average
            resident((3, LE)),                                # bias / gamma / beta
        ],
        out_specs=pl.BlockSpec((bb, 1, LE), lambda i: (i, 0, 0)),
        compiler_params=pltpu.CompilerParams(dimension_semantics=(sem,)),
    )(img3, heat3, w_tiled, m_group, aux)
    return out.reshape(B, L, E)


# ---------------------------------------------------------------------------
# Pure-JAX reference (mirror of the PyTorch forward, eval mode)
# ---------------------------------------------------------------------------
def reference(img_feat, heat_feat, params, num_heads, eps=1e-5):
    (w_ip, b_ip, w_hp, b_hp, w_q, b_q, w_k, b_k,
     w_v, b_v, w_o, b_o, gamma, beta) = params
    B, L, E = img_feat.shape
    Dh = E // num_heads
    proj_heat = (heat_feat @ w_hp.T + b_hp)[:, None, :]       # (B, 1, E)
    proj_img = img_feat @ w_ip.T + b_ip                       # (B, L, E)
    q = proj_img @ w_q.T + b_q
    k = proj_heat @ w_k.T + b_k
    v = proj_heat @ w_v.T + b_v
    qh = q.reshape(B, L, num_heads, Dh).transpose(0, 2, 1, 3)
    kh = k.reshape(B, 1, num_heads, Dh).transpose(0, 2, 1, 3)
    vh = v.reshape(B, 1, num_heads, Dh).transpose(0, 2, 1, 3)
    scores = jnp.einsum('bhld,bhsd->bhls', qh, kh) / math.sqrt(Dh)
    p = jax.nn.softmax(scores, axis=-1)
    ah = jnp.einsum('bhls,bhsd->bhld', p, vh)
    attn = ah.transpose(0, 2, 1, 3).reshape(B, L, E)
    attn_out = attn @ w_o.T + b_o
    y = img_feat + attn_out
    mu = y.mean(-1, keepdims=True)
    var = ((y - mu) ** 2).mean(-1, keepdims=True)
    return (y - mu) / jnp.sqrt(var + eps) * gamma + beta


if __name__ == "__main__":
    B, L, E, H = 2, 8, 32, 4
    key = jax.random.PRNGKey(0)
    keys = jax.random.split(key, 16)

    img = jax.random.normal(keys[0], (B, L, E), jnp.float32)
    heat = jax.random.normal(keys[1], (B, E), jnp.float32)

    def lin(kw, kb, fan_out, fan_in):
        bound = 1.0 / math.sqrt(fan_in)
        w = jax.random.uniform(kw, (fan_out, fan_in), jnp.float32, -bound, bound)
        b = jax.random.uniform(kb, (fan_out,), jnp.float32, -bound, bound)
        return w, b

    w_ip, b_ip = lin(keys[2], keys[3], E, E)      # img_proj
    w_hp, b_hp = lin(keys[4], keys[5], E, E)      # heat_proj
    w_q, b_q = lin(keys[6], keys[7], E, E)        # MHA in_proj (q slice)
    w_k, b_k = lin(keys[8], keys[9], E, E)        # MHA in_proj (k slice)
    w_v, b_v = lin(keys[10], keys[11], E, E)      # MHA in_proj (v slice)
    w_o, b_o = lin(keys[12], keys[13], E, E)      # MHA out_proj
    gamma = jnp.ones((E,), jnp.float32) + 0.05 * jax.random.normal(keys[14], (E,), jnp.float32)
    beta = 0.05 * jax.random.normal(keys[15], (E,), jnp.float32)

    params = (w_ip, b_ip, w_hp, b_hp, w_q, b_q, w_k, b_k,
              w_v, b_v, w_o, b_o, gamma, beta)

    # TODO(synk): dropout is modeled as identity (inference); training-mode RNG dropout not implemented.
    ref = reference(img, heat, params, H)

    # Hoist the (precision-pinned) host-side parameter fusion out of the call path.
    fused = fuse_cross_modal_params(params, L)
    fwd = jax.jit(functools.partial(cross_modal_attention, fused=fused))

    # f32 I/O path (bit-for-bit comparable to the f32 reference)
    out = jax.block_until_ready(fwd(img, heat))
    np.testing.assert_allclose(np.asarray(out), np.asarray(ref), rtol=1e-5, atol=1e-5)

    # bf16 I/O path (HBM-bandwidth win at scale; compute stays f32 in-kernel)
    img_bf16 = img.astype(jnp.bfloat16)
    out_bf16 = jax.block_until_ready(fwd(img_bf16, heat))
    ref_bf16 = reference(img_bf16.astype(jnp.float32), heat, params, H)
    np.testing.assert_allclose(np.asarray(out_bf16, dtype=np.float32),
                               np.asarray(ref_bf16), rtol=2e-2, atol=3e-2)

    print("KERNEL_OK")
</pallas_src>

<mosaic_0001>
module attributes {stable_mosaic.version = 11 : i64} {
  func.func @_cma_kernel(%arg0: i32, %arg1: memref<2x1x256xf32, #tpu.memory_space<vmem>>, %arg2: memref<2x1x32xf32, #tpu.memory_space<vmem>>, %arg3: memref<32x256xf32, #tpu.memory_space<vmem>>, %arg4: memref<256x256xf32, #tpu.memory_space<vmem>>, %arg5: memref<3x256xf32, #tpu.memory_space<vmem>>, %arg6: memref<2x1x256xf32, #tpu.memory_space<vmem>>) attributes {dimension_semantics = [#tpu.dimension_semantics<parallel>], iteration_bounds = array<i64: 1>, scalar_prefetch = 0 : i64, scratch_operands = 0 : i64, tpu.core_type = #tpu.core_type<tc>, window_params = [{transform_indices = @transform_0, window_bounds = array<i64: 2, 1, 256>}, {transform_indices = @transform_1, window_bounds = array<i64: 2, 1, 32>}, {pipeline_mode = #tpu.pipeline_mode<synchronous>, transform_indices = @transform_2, window_bounds = array<i64: 32, 256>}, {pipeline_mode = #tpu.pipeline_mode<synchronous>, transform_indices = @transform_3, window_bounds = array<i64: 256, 256>}, {pipeline_mode = #tpu.pipeline_mode<synchronous>, transform_indices = @transform_4, window_bounds = array<i64: 3, 256>}, {transform_indices = @transform_5, window_bounds = array<i64: 2, 1, 256>}]} {
    %c0 = arith.constant 0 : index
    %c0_0 = arith.constant 0 : index
    %c0_1 = arith.constant 0 : index
    %0 = vector.load %arg1[%c0, %c0_0, %c0_1] : memref<2x1x256xf32, #tpu.memory_space<vmem>>, vector<2x1x256xf32>
    %1 = vector.shape_cast %0 : vector<2x1x256xf32> to vector<2x256xf32>
    %c0_2 = arith.constant 0 : index
    %c0_3 = arith.constant 0 : index
    %c0_4 = arith.constant 0 : index
    %2 = vector.load %arg2[%c0_2, %c0_3, %c0_4] : memref<2x1x32xf32, #tpu.memory_space<vmem>>, vector<2x1x32xf32>
    %3 = vector.shape_cast %2 : vector<2x1x32xf32> to vector<2x32xf32>
    %c0_5 = arith.constant 0 : index
    %c0_6 = arith.constant 0 : index
    %4 = vector.load %arg5[%c0_5, %c0_6] : memref<3x256xf32, #tpu.memory_space<vmem>>, vector<1x256xf32>
    %c1 = arith.constant 1 : index
    %c0_7 = arith.constant 0 : index
    %5 = vector.load %arg5[%c1, %c0_7] : memref<3x256xf32, #tpu.memory_space<vmem>>, vector<1x256xf32>
    %c2 = arith.constant 2 : index
    %c0_8 = arith.constant 0 : index
    %6 = vector.load %arg5[%c2, %c0_8] : memref<3x256xf32, #tpu.memory_space<vmem>>, vector<1x256xf32>
    %c0_9 = arith.constant 0 : index
    %c0_10 = arith.constant 0 : index
    %7 = vector.load %arg3[%c0_9, %c0_10] : memref<32x256xf32, #tpu.memory_space<vmem>>, vector<32x256xf32>
    %cst = arith.constant dense<0.000000e+00> : vector<2x256xf32>
    %8 = tpu.matmul %3, %7, %cst {dimension_numbers = #tpu.dot_dimension_numbers<[1], [0], [0], [1], [0, 0, 1, 1], [], []>} : vector<2x32xf32>, vector<32x256xf32>, vector<2x256xf32> -> vector<2x256xf32>
    %9 = vector.broadcast %4 : vector<1x256xf32> to vector<2x256xf32>
    %10 = arith.addf %8, %9 : vector<2x256xf32>
    %11 = arith.addf %1, %10 : vector<2x256xf32>
    %c0_11 = arith.constant 0 : index
    %c0_12 = arith.constant 0 : index
    %12 = vector.load %arg4[%c0_11, %c0_12] : memref<256x256xf32, #tpu.memory_space<vmem>>, vector<256x256xf32>
    %cst_13 = arith.constant dense<0.000000e+00> : vector<2x256xf32>
    %13 = tpu.matmul %11, %12, %cst_13 {dimension_numbers = #tpu.dot_dimension_numbers<[1], [0], [0], [1], [0, 0, 1, 1], [], []>} : vector<2x256xf32>, vector<256x256xf32>, vector<2x256xf32> -> vector<2x256xf32>
    %14 = arith.subf %11, %13 : vector<2x256xf32>
    %15 = arith.mulf %14, %14 : vector<2x256xf32>
    %c0_14 = arith.constant 0 : index
    %c0_15 = arith.constant 0 : index
    %16 = vector.load %arg4[%c0_14, %c0_15] : memref<256x256xf32, #tpu.memory_space<vmem>>, vector<256x256xf32>
    %cst_16 = arith.constant dense<0.000000e+00> : vector<2x256xf32>
    %17 = tpu.matmul %15, %16, %cst_16 {dimension_numbers = #tpu.dot_dimension_numbers<[1], [0], [0], [1], [0, 0, 1, 1], [], []>} : vector<2x256xf32>, vector<256x256xf32>, vector<2x256xf32> -> vector<2x256xf32>
    %cst_17 = arith.constant 9.99999974E-6 : f32
    %18 = vector.broadcast %cst_17 : f32 to vector<2x256xf32>
    %19 = arith.addf %17, %18 : vector<2x256xf32>
    %20 = math.rsqrt %19 : vector<2x256xf32>
    %21 = arith.mulf %14, %20 : vector<2x256xf32>
    %22 = vector.broadcast %5 : vector<1x256xf32> to vector<2x256xf32>
    %23 = arith.mulf %21, %22 : vector<2x256xf32>
    %24 = vector.broadcast %6 : vector<1x256xf32> to vector<2x256xf32>
    %25 = arith.addf %23, %24 : vector<2x256xf32>
    %c0_18 = arith.constant 0 : index
    %c0_19 = arith.constant 0 : index
    %c0_20 = arith.constant 0 : index
    %26 = vector.load %arg6[%c0_18, %c0_19, %c0_20] : memref<2x1x256xf32, #tpu.memory_space<vmem>>, vector<2x1x256xf32>
    %27 = vector.shape_cast %26 : vector<2x1x256xf32> to vector<2x256xf32>
    %28 = vector.shape_cast %25 : vector<2x256xf32> to vector<2x1x256xf32>
    tpu.vector_store %arg6[%c0_18, %c0_19, %c0_20], %28 {strides = array<i32>} : memref<2x1x256xf32, #tpu.memory_space<vmem>>, vector<2x1x256xf32>,
    return
  }
  func.func @transform_0(%arg0: i32) -> (i32, i32, i32) {
    %c0_i32 = arith.constant 0 : i32
    %c0_i32_0 = arith.constant 0 : i32
    %c0_i32_1 = arith.constant 0 : i32
    return %arg0, %c0_i32, %c0_i32_0 : i32, i32, i32
  }
  func.func @transform_1(%arg0: i32) -> (i32, i32, i32) {
    %c0_i32 = arith.constant 0 : i32
    %c0_i32_0 = arith.constant 0 : i32
    %c0_i32_1 = arith.constant 0 : i32
    return %arg0, %c0_i32, %c0_i32_0 : i32, i32, i32
  }
  func.func @transform_2(%arg0: i32) -> (i32, i32) {
    %c0_i32 = arith.constant 0 : i32
    %c0_i32_0 = arith.constant 0 : i32
    %c0_i32_1 = arith.constant 0 : i32
    return %c0_i32, %c0_i32_0 : i32, i32
  }
  func.func @transform_3(%arg0: i32) -> (i32, i32) {
    %c0_i32 = arith.constant 0 : i32
    %c0_i32_0 = arith.constant 0 : i32
    %c0_i32_1 = arith.constant 0 : i32
    return %c0_i32, %c0_i32_0 : i32, i32
  }
  func.func @transform_4(%arg0: i32) -> (i32, i32) {
    %c0_i32 = arith.constant 0 : i32
    %c0_i32_0 = arith.constant 0 : i32
    %c0_i32_1 = arith.constant 0 : i32
    return %c0_i32, %c0_i32_0 : i32, i32
  }
  func.func @transform_5(%arg0: i32) -> (i32, i32, i32) {
    %c0_i32 = arith.constant 0 : i32
    %c0_i32_0 = arith.constant 0 : i32
    %c0_i32_1 = arith.constant 0 : i32
    return %arg0, %c0_i32, %c0_i32_0 : i32, i32, i32
  }
}

</mosaic_0001>

<llo_original>
// kernel: cross_modal_attention.1
$region0: #{cross_modal_attention.1}
  #allocation0 [shape = 'u32[]', space=smem, size = 0x4, offset = 0x4, fixed_abs, tag = 'smem constant byte address 0x4 - core index']
  #allocation1 [shape = 'u32[144,128]{1,0:T(1,128)}', space=vmem, size = 0x12000, scoped, tag = 'internal scratch']
  %s0 = inlined_call_operand.vmem [shape: f32[2,1,256], index: 0, kind: input, shape index: {}]
  %s1 = inlined_call_operand.vmem [shape: f32[2,1,32], index: 1, kind: input, shape index: {}]
  %s2 = inlined_call_operand.hbm [shape: f32[32,256], index: 2, kind: input, shape index: {}]
  %s3 = inlined_call_operand.hbm [shape: f32[256,256], index: 3, kind: input, shape index: {}]
  %s4 = inlined_call_operand.vmem [shape: f32[3,256], index: 4, kind: input, shape index: {}]
  %s5 = inlined_call_operand.vmem [shape: f32[2,1,256], index: 5, kind: output, shape index: {}]
  %s6 = sld [smem:[#allocation0]]
  $region38: #{cross_modal_attention.1} parent=0
    _
  %s8 = ssub.s32 1, %s6
  %s9 = scalar_select 0, %s8, %s6
  $region1: #{cross_modal_attention.1} parent=0
    #allocation2 [shape = 'u8[32768]{0}', space=vmem, size = 0x8000, scoped, tag = 'input window, operand 2, single buffered']
    #allocation3 [shape = 's32[1]{0}', space=sflag, size = 0x4, scoped, tag = 'scoped memory for cross_modal_attention.1']
    #allocation4 [shape = 'u8[262144]{0}', space=vmem, size = 0x40000, scoped, tag = 'input window, operand 3, single buffered']
    #allocation5 [shape = 's32[1]{0}', space=sflag, size = 0x4, scoped, tag = 'scoped memory for cross_modal_attention.1']
    %10 = vsyncpa [#allocation3], 0
    %11 = vsyncpa [#allocation5], 0
    // Predicated region
    $region2: #{cross_modal_attention.1} parent=1 // pred_check
      _
    $region3: #{cross_modal_attention.1} parent=1 // pred_check_branch
      %13 = sbr.rel (0) target = $region5
    $region4: #{cross_modal_attention.1} parent=1 // pred_region
      _
    $region5: #{cross_modal_attention.1} parent=1 // pred_fallthru
      _
    // Predicated region
    $region6: #{cross_modal_attention.1} parent=1 // pred_check
      _
    $region7: #{cross_modal_attention.1} parent=1 // pred_check_branch
      %15 = sbr.rel (0) target = $region9
    $region8: #{cross_modal_attention.1} parent=1 // pred_region
      _
    $region9: #{cross_modal_attention.1} parent=1 // pred_fallthru
      _
    // Predicated region
    $region10: #{cross_modal_attention.1} parent=1 // pred_check
      _
    $region11: #{cross_modal_attention.1} parent=1 // pred_check_branch
      %17 = sbr.rel (0) target = $region13
    $region12: #{cross_modal_attention.1} parent=1 // pred_region
      %s19 = ssub.s32 1024, 1024
      %20 = vsyncadd [#allocation3], %s19
      %s21 = sshll.u32 [#allocation2], 4
      %s22 = int_to_ptr.vmem [resolvable:$true] %s21
      %27 = dma.hbm_to_vmem [thread:$0]  %s2, 1024, %s22, [#allocation3], 256, 256, 16
    $region13: #{cross_modal_attention.1} parent=1 // pred_fallthru
      _
    // Predicated region
    $region14: #{cross_modal_attention.1} parent=1 // pred_check
      _
    $region15: #{cross_modal_attention.1} parent=1 // pred_check_branch
      %29 = sbr.rel (0) target = $region17
    $region16: #{cross_modal_attention.1} parent=1 // pred_region
      %s31 = ssub.s32 8192, 8192
      %32 = vsyncadd [#allocation5], %s31
      %s33 = sshll.u32 [#allocation4], 4
      %s34 = int_to_ptr.vmem [resolvable:$true] %s33
      %39 = dma.hbm_to_vmem [thread:$0]  %s3, 8192, %s34, [#allocation5], 256, 256, 16
    $region17: #{cross_modal_attention.1} parent=1 // pred_fallthru
      _
    // Predicated region
    $region18: #{cross_modal_attention.1} parent=1 // pred_check
      _
    $region19: #{cross_modal_attention.1} parent=1 // pred_check_branch
      %41 = sbr.rel (0) target = $region21
    $region20: #{cross_modal_attention.1} parent=1 // pred_region
      _
    $region21: #{cross_modal_attention.1} parent=1 // pred_fallthru
      _
    // Predicated region
    $region22: #{cross_modal_attention.1} parent=1 // pred_check
      _
    $region23: #{cross_modal_attention.1} parent=1 // pred_check_branch
      %43 = sbr.rel (0) target = $region25
    $region24: #{cross_modal_attention.1} parent=1 // pred_region
      %44 = dma.done [#allocation3], 1024
    $region25: #{cross_modal_attention.1} parent=1 // pred_fallthru
      _
    // Predicated region
    $region26: #{cross_modal_attention.1} parent=1 // pred_check
      _
    $region27: #{cross_modal_attention.1} parent=1 // pred_check_branch
      %46 = sbr.rel (0) target = $region29
    $region28: #{cross_modal_attention.1} parent=1 // pred_region
      %47 = dma.done [#allocation5], 8192
    $region29: #{cross_modal_attention.1} parent=1 // pred_fallthru
      _
    %v48 = vld [vmem:[%s0] sm:$0x3]
    %v49 = vld [vmem:[%s0 + $0x2] sm:$0x3]
    %v50 = vld [vmem:[%s1] sm:$0x1]
    %v51 = vld [vmem:[%s1 + $0x1] sm:$0x1]
    %v52 = vld [vmem:[%s4] ss:$4 sm:$0x3]
    %s53 = scalar_lea.vmem %s4, 1
    %v54 = vld [vmem:[%s53] ss:$4 sm:$0x3]
    %s55 = scalar_lea.vmem %s4, 2
    %v56 = vld [vmem:[%s55] ss:$4 sm:$0x3]
    %v57 = vld [vmem:[#allocation2] sm:$0xff]
    %v58 = vld [vmem:[#allocation2 + $0x8] sm:$0xff]
    %v59 = vld [vmem:[#allocation2 + $0x10] sm:$0xff]
    %v60 = vld [vmem:[#allocation2 + $0x18] sm:$0xff]
    %v61 = vld [vmem:[#allocation2 + $0x20] sm:$0xff]
    %v62 = vld [vmem:[#allocation2 + $0x28] sm:$0xff]
    %v63 = vld [vmem:[#allocation2 + $0x30] sm:$0xff]
    %v64 = vld [vmem:[#allocation2 + $0x38] sm:$0xff]
    %v66 = vlaneseq
    %v67 = vshrl.u32 %v66, 7
    %v68 = vsub.s32 0, %v67
    %v69 = vrot.slane %v52, %v68
    %v70 = vlaneseq
    %v71 = vshrl.u32 %v70, 7
    %v72 = vsub.s32 1, %v71
    %v73 = vrot.slane %v52, %v72
    %v78 = vcombine.low %v50, %v51
    %v80 = vunpack.c.l.s4 1966171168
    %v81 = vunpack.c.0.s8 %v80
    %v82 = vlaneseq
    %v83 = vshrl.u32 %v82, 7
    %v84 = vsub.s32 %v81, %v83
    %v85 = vrot.slane %v78, %v84
    %v87 = vunpack.c.l.s4 1966171168
    %v88 = vunpack.c.0.s8 %v87
    %v89 = vlaneseq
    %v90 = vshrl.u32 %v89, 7
    %v91 = vsub.s32 %v88, %v90
    %v92 = vrot.slane %v85, %v91
    %vm93 = vcmask 261120
    %v94 = vsel %vm93, %v92, 0
    %96 = vmatprep.subr.mxu0 0.0
    %97 = vmatpush1.msra.mxu0 0.0
    %98 = vmatprep.subr.mxu0 0.0
    %99 = vmatpush1.msra.mxu0 0.0
    %100 = vmatprep.subr.mxu0 0.0
    %101 = vmatpush1.msra.mxu0 0.0
    %102 = vmatprep.subr.mxu0 0.0
    %103 = vmatpush1.msra.mxu0 0.0
    %104 = vmatprep.subr.mxu0 0.0
    %105 = vmatpush1.msra.mxu0 0.0
    %106 = vmatprep.subr.mxu0 0.0
    %107 = vmatpush1.msra.mxu0 0.0
    %108 = vmatprep.subr.mxu0 0.0
    %109 = vmatpush1.msra.mxu0 0.0
    %110 = vmatprep.subr.mxu0 0.0
    %111 = vmatpush1.msra.mxu0 0.0
    %112 = vmatprep.subr.mxu0 0.0
    %113 = vmatpush1.msra.mxu0 0.0
    %114 = vmatprep.subr.mxu0 0.0
    %115 = vmatpush1.msra.mxu0 0.0
    %116 = vmatprep.subr.mxu0 0.0
    %117 = vmatpush1.msra.mxu0 0.0
    %118 = vmatprep.subr.mxu0 0.0
    %119 = vmatpush1.msra.mxu0 0.0
    %120 = vmatprep.subr.mxu0 %v64
    %121 = vmatpush1.msra.mxu0 %v63
    %122 = vmatprep.subr.mxu0 %v62
    %123 = vmatpush1.msra.mxu0 %v61
    %124 = vmatprep.subr.mxu0 %v60
    %125 = vmatpush1.msra.mxu0 %v59
    %126 = vmatprep.subr.mxu0 %v58
    %127 = vmatpush1.msra.mxu0 %v57
    %128 = vmatprep.subr.mxu0 0.0
    %129 = vmatpush2.msra.mxu0 0.0
    %130 = vmatprep.subr.mxu0 0.0
    %131 = vmatpush2.msra.mxu0 0.0
    %132 = vmatprep.subr.mxu0 0.0
    %133 = vmatpush2.msra.mxu0 0.0
    %134 = vmatprep.subr.mxu0 0.0
    %135 = vmatpush2.msra.mxu0 0.0
    %136 = vmatprep.subr.mxu0 0.0
    %137 = vmatpush2.msra.mxu0 0.0
    %138 = vmatprep.subr.mxu0 0.0
    %139 = vmatpush2.msra.mxu0 0.0
    %140 = vmatprep.subr.mxu0 0.0
    %141 = vmatpush2.msra.mxu0 0.0
    %142 = vmatprep.subr.mxu0 0.0
    %143 = vmatpush2.msra.mxu0 0.0
    %144 = vmatprep.subr.mxu0 0.0
    %145 = vmatpush2.msra.mxu0 0.0
    %146 = vmatprep.subr.mxu0 0.0
    %147 = vmatpush2.msra.mxu0 0.0
    %148 = vmatprep.subr.mxu0 0.0
    %149 = vmatpush2.msra.mxu0 0.0
    %150 = vmatprep.subr.mxu0 0.0
    %151 = vmatpush2.msra.mxu0 0.0
    %152 = vmatprep.subr.mxu0 0.0
    %153 = vmatpush2.msra.mxu0 0.0
    %154 = vmatprep.subr.mxu0 0.0
    %155 = vmatpush2.msra.mxu0 0.0
    %156 = vmatprep.subr.mxu0 0.0
    %157 = vmatpush2.msra.mxu0 0.0
    %158 = vmatprep.subr.mxu0 0.0
    %159 = vmatpush2.msra.mxu0 0.0
    %160 = vmatprep.mubr.f32.mxu0 0.0
    %161 = vmatmul.mubr.f32.gmra.mxu0 %v94
    %v162 = vpop.f32.mrf.mxu0
    %v163 = vadd.f32 %v69, %v162
    %v164 = vpop.f32.mrf.mxu0
    %v165 = vadd.f32 %v73, %v164
    %166 = vdwg.mxu0
    %v169 = vcombine.low %v163, %v165
    %v171 = vunpack.c.l.s4 1966171168
    %v172 = vunpack.c.0.s8 %v171
    %v173 = vlaneseq
    %v174 = vshrl.u32 %v173, 7
    %v175 = vsub.s32 %v172, %v174
    %v176 = vrot.slane %v169, %v175
    %v177 = vcombine.high %v176, %v176
    %v179 = vunpack.c.l.s4 1966171168
    %v180 = vunpack.c.0.s8 %v179
    %v181 = vlaneseq
    %v182 = vshrl.u32 %v181, 7
    %v183 = vsub.s32 %v180, %v182
    %v184 = vrot.slane %v176, %v183
    %v186 = vunpack.c.l.s4 1966171168
    %v187 = vunpack.c.0.s8 %v186
    %v188 = vlaneseq
    %v189 = vshrl.u32 %v188, 7
    %v190 = vsub.s32 %v187, %v189
    %v191 = vrot.slane %v177, %v190
    %v194 = vadd.f32 %v48, %v184
    %v195 = vadd.f32 %v49, %v191
    %v196 = vld [vmem:[#allocation4] sm:$0xff]
    %v197 = vld [vmem:[#allocation4 + $0x8] sm:$0xff]
    %v198 = vld [vmem:[#allocation4 + $0x10] sm:$0xff]
    %v199 = vld [vmem:[#allocation4 + $0x18] sm:$0xff]
    %v200 = vld [vmem:[#allocation4 + $0x20] sm:$0xff]
    %v201 = vld [vmem:[#allocation4 + $0x28] sm:$0xff]
    %v202 = vld [vmem:[#allocation4 + $0x30] sm:$0xff]
    %v203 = vld [vmem:[#allocation4 + $0x38] sm:$0xff]
    %v204 = vld [vmem:[#allocation4 + $0x40] sm:$0xff]
    %v205 = vld [vmem:[#allocation4 + $0x48] sm:$0xff]
    %v206 = vld [vmem:[#allocation4 + $0x50] sm:$0xff]
    %v207 = vld [vmem:[#allocation4 + $0x58] sm:$0xff]
    %v208 = vld [vmem:[#allocation4 + $0x60] sm:$0xff]
    %v209 = vld [vmem:[#allocation4 + $0x68] sm:$0xff]
    %v210 = vld [vmem:[#allocation4 + $0x70] sm:$0xff]
    %v211 = vld [vmem:[#allocation4 + $0x78] sm:$0xff]
    %v212 = vld [vmem:[#allocation4 + $0x80] sm:$0xff]
    %v213 = vld [vmem:[#allocation4 + $0x88] sm:$0xff]
    %v214 = vld [vmem:[#allocation4 + $0x90] sm:$0xff]
    %v215 = vld [vmem:[#allocation4 + $0x98] sm:$0xff]
    %v216 = vld [vmem:[#allocation4 + $0xa0] sm:$0xff]
    %v217 = vld [vmem:[#allocation4 + $0xa8] sm:$0xff]
    %v218 = vld [vmem:[#allocation4 + $0xb0] sm:$0xff]
    %v219 = vld [vmem:[#allocation4 + $0xb8] sm:$0xff]
    %v220 = vld [vmem:[#allocation4 + $0xc0] sm:$0xff]
    %v221 = vld [vmem:[#allocation4 + $0xc8] sm:$0xff]
    %v222 = vld [vmem:[#allocation4 + $0xd0] sm:$0xff]
    %v223 = vld [vmem:[#allocation4 + $0xd8] sm:$0xff]
    %v224 = vld [vmem:[#allocation4 + $0xe0] sm:$0xff]
    %v225 = vld [vmem:[#allocation4 + $0xe8] sm:$0xff]
    %v226 = vld [vmem:[#allocation4 + $0xf0] sm:$0xff]
    %v227 = vld [vmem:[#allocation4 + $0xf8] sm:$0xff]
    %v228 = vld [vmem:[#allocation4 + $0x100] sm:$0xff]
    %v229 = vld [vmem:[#allocation4 + $0x108] sm:$0xff]
    %v230 = vld [vmem:[#allocation4 + $0x110] sm:$0xff]
    %v231 = vld [vmem:[#allocation4 + $0x118] sm:$0xff]
    %v232 = vld [vmem:[#allocation4 + $0x120] sm:$0xff]
    %v233 = vld [vmem:[#allocation4 + $0x128] sm:$0xff]
    %v234 = vld [vmem:[#allocation4 + $0x130] sm:$0xff]
    %v235 = vld [vmem:[#allocation4 + $0x138] sm:$0xff]
    %v236 = vld [vmem:[#allocation4 + $0x140] sm:$0xff]
    %v237 = vld [vmem:[#allocation4 + $0x148] sm:$0xff]
    %v238 = vld [vmem:[#allocation4 + $0x150] sm:$0xff]
    %v239 = vld [vmem:[#allocation4 + $0x158] sm:$0xff]
    %v240 = vld [vmem:[#allocation4 + $0x160] sm:$0xff]
    %v241 = vld [vmem:[#allocation4 + $0x168] sm:$0xff]
    %v242 = vld [vmem:[#allocation4 + $0x170] sm:$0xff]
    %v243 = vld [vmem:[#allocation4 + $0x178] sm:$0xff]
    %v244 = vld [vmem:[#allocation4 + $0x180] sm:$0xff]
    %v245 = vld [vmem:[#allocation4 + $0x188] sm:$0xff]
    %v246 = vld [vmem:[#allocation4 + $0x190] sm:$0xff]
    %v247 = vld [vmem:[#allocation4 + $0x198] sm:$0xff]
    %v248 = vld [vmem:[#allocation4 + $0x1a0] sm:$0xff]
    %v249 = vld [vmem:[#allocation4 + $0x1a8] sm:$0xff]
    %v250 = vld [vmem:[#allocation4 + $0x1b0] sm:$0xff]
    %v251 = vld [vmem:[#allocation4 + $0x1b8] sm:$0xff]
    %v252 = vld [vmem:[#allocation4 + $0x1c0] sm:$0xff]
    %v253 = vld [vmem:[#allocation4 + $0x1c8] sm:$0xff]
    %v254 = vld [vmem:[#allocation4 + $0x1d0] sm:$0xff]
    %v255 = vld [vmem:[#allocation4 + $0x1d8] sm:$0xff]
    %v256 = vld [vmem:[#allocation4 + $0x1e0] sm:$0xff]
    %v257 = vld [vmem:[#allocation4 + $0x1e8] sm:$0xff]
    %v258 = vld [vmem:[#allocation4 + $0x1f0] sm:$0xff]
    %v259 = vld [vmem:[#allocation4 + $0x1f8] sm:$0xff]
    %v262 = vcombine.low %v194, %v195
    %v264 = vunpack.c.l.s4 1966171168
    %v265 = vunpack.c.0.s8 %v264
    %v266 = vlaneseq
    %v267 = vshrl.u32 %v266, 7
    %v268 = vsub.s32 %v265, %v267
    %v269 = vrot.slane %v262, %v268
    %v270 = vcombine.high %v269, %v269
    %v272 = vunpack.c.l.s4 1966171168
    %v273 = vunpack.c.0.s8 %v272
    %v274 = vlaneseq
    %v275 = vshrl.u32 %v274, 7
    %v276 = vsub.s32 %v273, %v275
    %v277 = vrot.slane %v269, %v276
    %v279 = vunpack.c.l.s4 1966171168
    %v280 = vunpack.c.0.s8 %v279
    %v281 = vlaneseq
    %v282 = vshrl.u32 %v281, 7
    %v283 = vsub.s32 %v280, %v282
    %v284 = vrot.slane %v270, %v283
    %287 = vmatprep.subr.mxu0 %v227
    %288 = vmatpush1.msra.mxu0 %v226
    %289 = vmatprep.subr.mxu0 %v225
    %290 = vmatpush1.msra.mxu0 %v224
    %291 = vmatprep.subr.mxu0 %v223
    %292 = vmatpush1.msra.mxu0 %v222
    %293 = vmatprep.subr.mxu0 %v221
    %294 = vmatpush1.msra.mxu0 %v220
    %295 = vmatprep.subr.mxu0 %v219
    %296 = vmatpush1.msra.mxu0 %v218
    %297 = vmatprep.subr.mxu0 %v217
    %298 = vmatpush1.msra.mxu0 %v216
    %299 = vmatprep.subr.mxu0 %v215
    %300 = vmatpush1.msra.mxu0 %v214
    %301 = vmatprep.subr.mxu0 %v213
    %302 = vmatpush1.msra.mxu0 %v212
    %303 = vmatprep.subr.mxu0 %v211
    %304 = vmatpush1.msra.mxu0 %v210
    %305 = vmatprep.subr.mxu0 %v209
    %306 = vmatpush1.msra.mxu0 %v208
    %307 = vmatprep.subr.mxu0 %v207
    %308 = vmatpush1.msra.mxu0 %v206
    %309 = vmatprep.subr.mxu0 %v205
    %310 = vmatpush1.msra.mxu0 %v204
    %311 = vmatprep.subr.mxu0 %v203
    %312 = vmatpush1.msra.mxu0 %v202
    %313 = vmatprep.subr.mxu0 %v201
    %314 = vmatpush1.msra.mxu0 %v200
    %315 = vmatprep.subr.mxu0 %v199
    %316 = vmatpush1.msra.mxu0 %v198
    %317 = vmatprep.subr.mxu0 %v197
    %318 = vmatpush1.msra.mxu0 %v196
    %319 = vmatprep.subr.mxu0 %v259
    %320 = vmatpush2.msra.mxu0 %v258
    %321 = vmatprep.subr.mxu0 %v257
    %322 = vmatpush2.msra.mxu0 %v256
    %323 = vmatprep.subr.mxu0 %v255
    %324 = vmatpush2.msra.mxu0 %v254
    %325 = vmatprep.subr.mxu0 %v253
    %326 = vmatpush2.msra.mxu0 %v252
    %327 = vmatprep.subr.mxu0 %v251
    %328 = vmatpush2.msra.mxu0 %v250
    %329 = vmatprep.subr.mxu0 %v249
    %330 = vmatpush2.msra.mxu0 %v248
    %331 = vmatprep.subr.mxu0 %v247
    %332 = vmatpush2.msra.mxu0 %v246
    %333 = vmatprep.subr.mxu0 %v245
    %334 = vmatpush2.msra.mxu0 %v244
    %335 = vmatprep.subr.mxu0 %v243
    %336 = vmatpush2.msra.mxu0 %v242
    %337 = vmatprep.subr.mxu0 %v241
    %338 = vmatpush2.msra.mxu0 %v240
    %339 = vmatprep.subr.mxu0 %v239
    %340 = vmatpush2.msra.mxu0 %v238
    %341 = vmatprep.subr.mxu0 %v237
    %342 = vmatpush2.msra.mxu0 %v236
    %343 = vmatprep.subr.mxu0 %v235
    %344 = vmatpush2.msra.mxu0 %v234
    %345 = vmatprep.subr.mxu0 %v233
    %346 = vmatpush2.msra.mxu0 %v232
    %347 = vmatprep.subr.mxu0 %v231
    %348 = vmatpush2.msra.mxu0 %v230
    %349 = vmatprep.subr.mxu0 %v229
    %350 = vmatpush2.msra.mxu0 %v228
    %351 = vmatprep.mubr.f32.mxu0 %v284
    %352 = vmatmul.mubr.f32.gmra.mxu0 %v277
    %v353 = vpop.f32.mrf.mxu0
    %v354 = vadd.f32 0.0, %v353
    %v355 = vpop.f32.mrf.mxu0
    %v356 = vadd.f32 0.0, %v355
    %357 = vdwg.mxu0
    %v360 = vcombine.low %v354, %v356
    %v362 = vunpack.c.l.s4 1966171168
    %v363 = vunpack.c.0.s8 %v362
    %v364 = vlaneseq
    %v365 = vshrl.u32 %v364, 7
    %v366 = vsub.s32 %v363, %v365
    %v367 = vrot.slane %v360, %v366
    %v368 = vcombine.high %v367, %v367
    %v370 = vunpack.c.l.s4 1966171168
    %v371 = vunpack.c.0.s8 %v370
    %v372 = vlaneseq
    %v373 = vshrl.u32 %v372, 7
    %v374 = vsub.s32 %v371, %v373
    %v375 = vrot.slane %v367, %v374
    %v377 = vunpack.c.l.s4 1966171168
    %v378 = vunpack.c.0.s8 %v377
    %v379 = vlaneseq
    %v380 = vshrl.u32 %v379, 7
    %v381 = vsub.s32 %v378, %v380
    %v382 = vrot.slane %v368, %v381
    %v385 = vsub.f32 %v194, %v375
    %v386 = vsub.f32 %v195, %v382
    %v387 = vmul.f32 %v385, %v385
    %v388 = vmul.f32 %v386, %v386
    %v391 = vcombine.low %v387, %v388
    %v393 = vunpack.c.l.s4 1966171168
    %v394 = vunpack.c.0.s8 %v393
    %v395 = vlaneseq
    %v396 = vshrl.u32 %v395, 7
    %v397 = vsub.s32 %v394, %v396
    %v398 = vrot.slane %v391, %v397
    %v399 = vcombine.high %v398, %v398
    %v401 = vunpack.c.l.s4 1966171168
    %v402 = vunpack.c.0.s8 %v401
    %v403 = vlaneseq
    %v404 = vshrl.u32 %v403, 7
    %v405 = vsub.s32 %v402, %v404
    %v406 = vrot.slane %v398, %v405
    %v408 = vunpack.c.l.s4 1966171168
    %v409 = vunpack.c.0.s8 %v408
    %v410 = vlaneseq
    %v411 = vshrl.u32 %v410, 7
    %v412 = vsub.s32 %v409, %v411
    %v413 = vrot.slane %v399, %v412
    %416 = vmatprep.subr.mxu0 %v227
    %417 = vmatpush1.msra.mxu0 %v226
    %418 = vmatprep.subr.mxu0 %v225
    %419 = vmatpush1.msra.mxu0 %v224
    %420 = vmatprep.subr.mxu0 %v223
    %421 = vmatpush1.msra.mxu0 %v222
    %422 = vmatprep.subr.mxu0 %v221
    %423 = vmatpush1.msra.mxu0 %v220
    %424 = vmatprep.subr.mxu0 %v219
    %425 = vmatpush1.msra.mxu0 %v218
    %426 = vmatprep.subr.mxu0 %v217
    %427 = vmatpush1.msra.mxu0 %v216
    %428 = vmatprep.subr.mxu0 %v215
    %429 = vmatpush1.msra.mxu0 %v214
    %430 = vmatprep.subr.mxu0 %v213
    %431 = vmatpush1.msra.mxu0 %v212
    %432 = vmatprep.subr.mxu0 %v211
    %433 = vmatpush1.msra.mxu0 %v210
    %434 = vmatprep.subr.mxu0 %v209
    %435 = vmatpush1.msra.mxu0 %v208
    %436 = vmatprep.subr.mxu0 %v207
    %437 = vmatpush1.msra.mxu0 %v206
    %438 = vmatprep.subr.mxu0 %v205
    %439 = vmatpush1.msra.mxu0 %v204
    %440 = vmatprep.subr.mxu0 %v203
    %441 = vmatpush1.msra.mxu0 %v202
    %442 = vmatprep.subr.mxu0 %v201
    %443 = vmatpush1.msra.mxu0 %v200
    %444 = vmatprep.subr.mxu0 %v199
    %445 = vmatpush1.msra.mxu0 %v198
    %446 = vmatprep.subr.mxu0 %v197
    %447 = vmatpush1.msra.mxu0 %v196
    %448 = vmatprep.subr.mxu0 %v259
    %449 = vmatpush2.msra.mxu0 %v258
    %450 = vmatprep.subr.mxu0 %v257
    %451 = vmatpush2.msra.mxu0 %v256
    %452 = vmatprep.subr.mxu0 %v255
    %453 = vmatpush2.msra.mxu0 %v254
    %454 = vmatprep.subr.mxu0 %v253
    %455 = vmatpush2.msra.mxu0 %v252
    %456 = vmatprep.subr.mxu0 %v251
    %457 = vmatpush2.msra.mxu0 %v250
    %458 = vmatprep.subr.mxu0 %v249
    %459 = vmatpush2.msra.mxu0 %v248
    %460 = vmatprep.subr.mxu0 %v247
    %461 = vmatpush2.msra.mxu0 %v246
    %462 = vmatprep.subr.mxu0 %v245
    %463 = vmatpush2.msra.mxu0 %v244
    %464 = vmatprep.subr.mxu0 %v243
    %465 = vmatpush2.msra.mxu0 %v242
    %466 = vmatprep.subr.mxu0 %v241
    %467 = vmatpush2.msra.mxu0 %v240
    %468 = vmatprep.subr.mxu0 %v239
    %469 = vmatpush2.msra.mxu0 %v238
    %470 = vmatprep.subr.mxu0 %v237
    %471 = vmatpush2.msra.mxu0 %v236
    %472 = vmatprep.subr.mxu0 %v235
    %473 = vmatpush2.msra.mxu0 %v234
    %474 = vmatprep.subr.mxu0 %v233
    %475 = vmatpush2.msra.mxu0 %v232
    %476 = vmatprep.subr.mxu0 %v231
    %477 = vmatpush2.msra.mxu0 %v230
    %478 = vmatprep.subr.mxu0 %v229
    %479 = vmatpush2.msra.mxu0 %v228
    %480 = vmatprep.mubr.f32.mxu0 %v413
    %481 = vmatmul.mubr.f32.gmra.mxu0 %v406
    %v482 = vpop.f32.mrf.mxu0
    %v483 = vadd.f32 1e-05, %v482
    %v484 = vpop.f32.mrf.mxu0
    %v485 = vadd.f32 1e-05, %v484
    %486 = vdwg.mxu0
    %v487 = vrsqrt.pop %v483
    %v488 = vrsqrt.pop %v485
    %v491 = vcombine.low %v487, %v488
    %v493 = vunpack.c.l.s4 1966171168
    %v494 = vunpack.c.0.s8 %v493
    %v495 = vlaneseq
    %v496 = vshrl.u32 %v495, 7
    %v497 = vsub.s32 %v494, %v496
    %v498 = vrot.slane %v491, %v497
    %v499 = vcombine.high %v498, %v498
    %v501 = vunpack.c.l.s4 1966171168
    %v502 = vunpack.c.0.s8 %v501
    %v503 = vlaneseq
    %v504 = vshrl.u32 %v503, 7
    %v505 = vsub.s32 %v502, %v504
    %v506 = vrot.slane %v498, %v505
    %v508 = vunpack.c.l.s4 1966171168
    %v509 = vunpack.c.0.s8 %v508
    %v510 = vlaneseq
    %v511 = vshrl.u32 %v510, 7
    %v512 = vsub.s32 %v509, %v511
    %v513 = vrot.slane %v499, %v512
    %v516 = vmul.f32 %v385, %v506
    %v517 = vmul.f32 %v386, %v513
    %v519 = vlaneseq
    %v520 = vshrl.u32 %v519, 7
    %v521 = vsub.s32 0, %v520
    %v522 = vrot.slane %v54, %v521
    %v523 = vlaneseq
    %v524 = vshrl.u32 %v523, 7
    %v525 = vsub.s32 1, %v524
    %v526 = vrot.slane %v54, %v525
    %v527 = vcombine.low %v522, %v526
    %v529 = vunpack.c.l.s4 1966171168
    %v530 = vunpack.c.0.s8 %v529
    %v531 = vlaneseq
    %v532 = vshrl.u32 %v531, 7
    %v533 = vsub.s32 %v530, %v532
    %v534 = vrot.slane %v527, %v533
    %v535 = vcombine.high %v534, %v534
    %v537 = vunpack.c.l.s4 1966171168
    %v538 = vunpack.c.0.s8 %v537
    %v539 = vlaneseq
    %v540 = vshrl.u32 %v539, 7
    %v541 = vsub.s32 %v538, %v540
    %v542 = vrot.slane %v534, %v541
    %v544 = vunpack.c.l.s4 1966171168
    %v545 = vunpack.c.0.s8 %v544
    %v546 = vlaneseq
    %v547 = vshrl.u32 %v546, 7
    %v548 = vsub.s32 %v545, %v547
    %v549 = vrot.slane %v535, %v548
    %v552 = vmul.f32 %v516, %v542
    %v553 = vmul.f32 %v517, %v549
    %v555 = vlaneseq
    %v556 = vshrl.u32 %v555, 7
    %v557 = vsub.s32 0, %v556
    %v558 = vrot.slane %v56, %v557
    %v559 = vlaneseq
    %v560 = vshrl.u32 %v559, 7
    %v561 = vsub.s32 1, %v560
    %v562 = vrot.slane %v56, %v561
    %v563 = vcombine.low %v558, %v562
    %v565 = vunpack.c.l.s4 1966171168
    %v566 = vunpack.c.0.s8 %v565
    %v567 = vlaneseq
    %v568 = vshrl.u32 %v567, 7
    %v569 = vsub.s32 %v566, %v568
    %v570 = vrot.slane %v563, %v569
    %v571 = vcombine.high %v570, %v570
    %v573 = vunpack.c.l.s4 1966171168
    %v574 = vunpack.c.0.s8 %v573
    %v575 = vlaneseq
    %v576 = vshrl.u32 %v575, 7
    %v577 = vsub.s32 %v574, %v576
    %v578 = vrot.slane %v570, %v577
    %v580 = vunpack.c.l.s4 1966171168
    %v581 = vunpack.c.0.s8 %v580
    %v582 = vlaneseq
    %v583 = vshrl.u32 %v582, 7
    %v584 = vsub.s32 %v581, %v583
    %v585 = vrot.slane %v571, %v584
    %v588 = vadd.f32 %v552, %v578
    %v589 = vadd.f32 %v553, %v585
    %v590 = vlaneseq
    %vm591 = vcmp.ge.s32.totalorder %v590, 0
    %vm592 = vcmp.lt.s32.totalorder %v590, 256
    %vm593 = vmand %vm591, %vm592
    %594 = vst.msk [vmem:[%s5] sm:$0x3] %vm593, %v588
    %595 = vst.msk [vmem:[%s5 + $0x2] sm:$0x3] %vm593, %v589
    // Predicated region
    $region30: #{cross_modal_attention.1} parent=1 // pred_check
      _
    $region31: #{cross_modal_attention.1} parent=1 // pred_check_branch
      %597 = sbr.rel (0) target = $region33
    $region32: #{cross_modal_attention.1} parent=1 // pred_region
      _
    $region33: #{cross_modal_attention.1} parent=1 // pred_fallthru
      _
    // Predicated region
    $region34: #{cross_modal_attention.1} parent=1 // pred_check
      _
    $region35: #{cross_modal_attention.1} parent=1 // pred_check_branch
      %599 = sbr.rel (0) target = $region37
    $region36: #{cross_modal_attention.1} parent=1 // pred_region
      _
    $region37: #{cross_modal_attention.1} parent=1 // pred_fallthru
      _
    %600 = vsyncpa [#allocation3], 1
    %601 = vsyncpa [#allocation5], 1

</llo_original>
